<compile_context>
chip_gen: v7x
topology: tpu7x:2x2x1
jax: 0.10.0
libtpu: 0.0.40
codegen_flags: <defaults>
</compile_context>

<pallas_src>
import functools

import jax
import jax.numpy as jnp
from jax.experimental import pallas as pl
from jax.experimental.pallas import tpu as pltpu


# ---------------------------------------------------------------------------
# Kernels
# ---------------------------------------------------------------------------

def _qk_bmm_vpu_kernel(q_ref, k_ref, o_ref, *, qt, kvt):
    """Small-QT path: VPU broadcast-multiply + H reduction (no MXU).

    q_ref: (TBM, QT, H), k_ref: (TBM, KVT, H), o_ref: (TBM, QT*KVT).
    """
    q = q_ref[...].astype(jnp.float32)        # hoisted casts (f32 accumulation)
    k = k_ref[...].astype(jnp.float32)
    rows = []
    for i in range(qt):                       # static, small unroll (qt <= 32)
        qi = q[:, i:i + 1, :]                 # (TBM, 1, H): sublane broadcast
        rows.append(jnp.sum(qi * k, axis=-1))  # (TBM, KVT)
    # Lane-concatenate the QT row-blocks -> (TBM, QT*KVT), element order
    # i*KVT + j, i.e. exactly the flattened (QT, KVT) score.  One dense store.
    s = rows[0] if qt == 1 else jnp.concatenate(rows, axis=-1)
    o_ref[...] = s.astype(o_ref.dtype)


def _qk_bmm_mxu_kernel(q_ref, k_ref, o_ref):
    """Large-QT fallback: batched MXU matmul with f32 accumulation.

    q_ref: (TBM, QT, H), k_ref: (TBM, KVT, H), o_ref: (TBM, QT, KVT).
    """
    o_ref[...] = jnp.einsum(
        "mqh,mkh->mqk", q_ref[...], k_ref[...],
        preferred_element_type=jnp.float32,
    ).astype(o_ref.dtype)


# ---------------------------------------------------------------------------
# Sizing helpers
# ---------------------------------------------------------------------------

def _round_up(x, m):
    return (x + m - 1) // m * m


def _sublane_multiple(dtype):
    # f32 -> 8, bf16/f16 -> 16, int8/fp8 -> 32 sublanes per VMEM tile.
    itemsize = jnp.dtype(dtype).itemsize
    return max(8, 32 // max(1, itemsize))


def _padded_tile_bytes(rows, cols, dtype):
    return (_round_up(rows, _sublane_multiple(dtype))
            * _round_up(cols, 128) * jnp.dtype(dtype).itemsize)


def _vmem_budgets():
    """(double-buffered block budget, scoped vmem limit), generation-aware."""
    cap = 64 * 1024 * 1024                     # conservative default (v7x/core)
    try:
        info = pltpu.get_tpu_info()
        cap = int(getattr(info, "vmem_capacity_bytes", cap))
    except Exception:
        pass
    # v5e/v6e (128 MiB):  ~48 MiB of blocks under a ~96 MiB scoped limit.
    # v7x   (64 MiB/TC):  ~24 MiB of blocks under a ~48 MiB scoped limit.
    block_budget = min(cap * 3 // 8, 48 * 1024 * 1024)
    vmem_limit = min(cap * 3 // 4, 100 * 1024 * 1024)
    return block_budget, vmem_limit


def _pick_block_bm(n, per_bm_bytes, block_budget_bytes):
    """Pick the fused-batch tile size.

    Constraints: double-buffered blocks fit the budget; grid length stays
    >= ~8 for pipelining / 2-TC sharding when N is large; tile is a multiple
    of 8 sublanes (or == N for tiny problems); prefer tiles that divide N
    (no ragged tail), and among those prefer an even number of grid steps.
    """
    if n <= 8:
        return n
    tbm = max(8, block_budget_bytes // (2 * max(1, per_bm_bytes)))
    if n >= 64:
        tbm = min(tbm, n // 8)                 # keep at least ~8 grid steps
    tbm = min(tbm, n, 4096)
    tbm = max(8, (tbm // 8) * 8)

    divisor, even_divisor = None, None
    cand = tbm
    while cand >= 8 and cand * 4 >= tbm:       # don't shrink the slab > 4x
        if n % cand == 0:
            if divisor is None:
                divisor = cand
            if (n // cand) % 2 == 0:
                even_divisor = cand
                break
        cand -= 8
    if even_divisor is not None:
        return even_divisor
    if divisor is not None:
        return divisor
    return tbm                                  # ragged tail -> Pallas clamping


def _sanitize_block_bm(block_bm, n):
    if n <= 8:
        return n
    block_bm = max(1, min(int(block_bm), n))
    if block_bm != n:
        block_bm = max(8, (block_bm // 8) * 8)  # second-minor dim of out block
    return block_bm


# ---------------------------------------------------------------------------
# Wrapper
# ---------------------------------------------------------------------------

def qk_bmm(q, k, *, block_bm=None):
    """Pallas implementation of QKBmm.forward.

    q: [B, M, QT, H], k: [B, M, KVT, H] -> [B, M, QT, KVT]
    """
    B, M, QT, H = q.shape
    kB, kM, KVT, kH = k.shape
    assert (kB, kM, kH) == (B, M, H), "q/k shape mismatch"
    out_dtype = jnp.result_type(q.dtype, k.dtype)

    N = B * M
    qf = q.reshape(N, QT, H)                  # free reshapes (contiguous dims)
    kf = k.reshape(N, KVT, H)

    # dtype-aware padded-VMEM footprint of one fused-batch element's tiles.
    per_bm = (_padded_tile_bytes(QT, H, q.dtype)
              + _padded_tile_bytes(KVT, H, k.dtype)
              + _round_up(QT * KVT, 128) * jnp.dtype(out_dtype).itemsize)

    block_budget, vmem_limit = _vmem_budgets()
    if block_bm is None:
        block_bm = _pick_block_bm(N, per_bm, block_budget)
    else:
        block_bm = _sanitize_block_bm(block_bm, N)

    grid_n = pl.cdiv(N, block_bm)             # ragged tail: clamped last block

    # Small QT (decode / score shapes): VPU kernel with lane-dense (N, QT*KVT)
    # output.  Large QT: batched MXU einsum with (N, QT, KVT) output.
    use_vpu = QT <= 32

    in_specs = [
        pl.BlockSpec((block_bm, QT, H), lambda i: (i, 0, 0)),
        pl.BlockSpec((block_bm, KVT, H), lambda i: (i, 0, 0)),
    ]
    if use_vpu:
        kernel = functools.partial(_qk_bmm_vpu_kernel, qt=QT, kvt=KVT)
        out_shape = jax.ShapeDtypeStruct((N, QT * KVT), out_dtype)
        out_specs = pl.BlockSpec((block_bm, QT * KVT), lambda i: (i, 0))
    else:
        kernel = _qk_bmm_mxu_kernel
        out_shape = jax.ShapeDtypeStruct((N, QT, KVT), out_dtype)
        out_specs = pl.BlockSpec((block_bm, QT, KVT), lambda i: (i, 0, 0))

    out = pl.pallas_call(
        kernel,
        out_shape=out_shape,
        grid_spec=pltpu.PrefetchScalarGridSpec(
            num_scalar_prefetch=0,
            grid=(grid_n,),
            in_specs=in_specs,
            out_specs=out_specs,
        ),
        compiler_params=pltpu.CompilerParams(
            dimension_semantics=("parallel",),  # shard batch loop on v7x 2 TCs
            vmem_limit_bytes=vmem_limit,
        ),
    )(qf, kf)

    # TODO(synk): fusing the softmax / score@V consumer (flash-style) would
    # remove the score HBM writeback entirely; out of scope for this module.
    return out.reshape(B, M, QT, KVT)


def qk_bmm_reference(q, k):
    # Pure-JAX reference reproducing the PyTorch semantics exactly.
    B, M, QT, H = q.shape
    _, _, KVT, _ = k.shape
    if QT != 1:
        qr = q.reshape(B, M, QT, 1, H)
        kr = k.reshape(B, M, 1, KVT, H)
    else:
        qr, kr = q, k
    score = jnp.sum(qr * kr, axis=-1, keepdims=True)
    return score.reshape(B, M, QT, KVT)


if __name__ == "__main__":
    key = jax.random.PRNGKey(0)
    kq, kk = jax.random.split(key)

    B, M, QT, KVT, H = 2, 4, 8, 8, 32
    q = jax.random.normal(kq, (B, M, QT, H), dtype=jnp.float32)
    k = jax.random.normal(kk, (B, M, KVT, H), dtype=jnp.float32)

    out = qk_bmm(q, k)
    jax.block_until_ready(out)
    ref = qk_bmm_reference(q, k)
    assert out.shape == (B, M, QT, KVT)
    assert jnp.allclose(out, ref, atol=1e-5, rtol=1e-5), "mismatch vs reference"

    # QT == 1 (decode) path of the reference semantics.
    q1 = q[:, :, :1, :]
    out1 = qk_bmm(q1, k)
    jax.block_until_ready(out1)
    ref1 = qk_bmm_reference(q1, k)
    assert jnp.allclose(out1, ref1, atol=1e-5, rtol=1e-5), "mismatch (QT=1)"

    # Ragged fused batch (N = 15): auto tile -> 8, two grid steps, clamped
    # partial last block (no jnp.pad / slice round-trip).
    B2, M2 = 3, 5
    kq2, kk2 = jax.random.split(jax.random.PRNGKey(1))
    q2 = jax.random.normal(kq2, (B2, M2, QT, H), dtype=jnp.float32)
    k2 = jax.random.normal(kk2, (B2, M2, KVT, H), dtype=jnp.float32)
    out2 = qk_bmm(q2, k2)
    jax.block_until_ready(out2)
    ref2 = qk_bmm_reference(q2, k2)
    assert jnp.allclose(out2, ref2, atol=1e-5, rtol=1e-5), "mismatch (ragged)"

    # Explicit tile override goes through the sanitizer (4 -> 8 here).
    out3 = qk_bmm(q2, k2, block_bm=4)
    jax.block_until_ready(out3)
    assert jnp.allclose(out3, ref2, atol=1e-5, rtol=1e-5), "mismatch (override)"

    print("KERNEL_OK")
</pallas_src>

<mosaic_0001>
module attributes {stable_mosaic.version = 11 : i64} {
  func.func @_qk_bmm_vpu_kernel(%arg0: i32, %arg1: memref<8x8x32xf32, #tpu.memory_space<vmem>>, %arg2: memref<8x8x32xf32, #tpu.memory_space<vmem>>, %arg3: memref<8x64xf32, #tpu.memory_space<vmem>>) attributes {dimension_semantics = [#tpu.dimension_semantics<parallel>], iteration_bounds = array<i64: 1>, scalar_prefetch = 0 : i64, scratch_operands = 0 : i64, tpu.core_type = #tpu.core_type<tc>, window_params = [{transform_indices = @transform_0, window_bounds = array<i64: 8, 8, 32>}, {transform_indices = @transform_1, window_bounds = array<i64: 8, 8, 32>}, {transform_indices = @transform_2, window_bounds = array<i64: 8, 64>}]} {
    %c0 = arith.constant 0 : index
    %c0_0 = arith.constant 0 : index
    %c0_1 = arith.constant 0 : index
    %0 = vector.load %arg1[%c0, %c0_0, %c0_1] : memref<8x8x32xf32, #tpu.memory_space<vmem>>, vector<8x8x32xf32>
    %c0_2 = arith.constant 0 : index
    %c0_3 = arith.constant 0 : index
    %c0_4 = arith.constant 0 : index
    %1 = vector.load %arg2[%c0_2, %c0_3, %c0_4] : memref<8x8x32xf32, #tpu.memory_space<vmem>>, vector<8x8x32xf32>
    %2 = vector.extract_strided_slice %0 {offsets = [0, 0, 0], sizes = [8, 1, 32], strides = [1, 1, 1]} : vector<8x8x32xf32> to vector<8x1x32xf32>
    %3 = vector.broadcast %2 : vector<8x1x32xf32> to vector<8x8x32xf32>
    %4 = arith.mulf %3, %1 : vector<8x8x32xf32>
    %cst = arith.constant dense<0.000000e+00> : vector<8x8xf32>
    %5 = vector.multi_reduction <add>, %4, %cst [2] : vector<8x8x32xf32> to vector<8x8xf32>
    %6 = vector.extract_strided_slice %0 {offsets = [0, 1, 0], sizes = [8, 1, 32], strides = [1, 1, 1]} : vector<8x8x32xf32> to vector<8x1x32xf32>
    %7 = vector.broadcast %6 : vector<8x1x32xf32> to vector<8x8x32xf32>
    %8 = arith.mulf %7, %1 : vector<8x8x32xf32>
    %cst_5 = arith.constant dense<0.000000e+00> : vector<8x8xf32>
    %9 = vector.multi_reduction <add>, %8, %cst_5 [2] : vector<8x8x32xf32> to vector<8x8xf32>
    %10 = vector.extract_strided_slice %0 {offsets = [0, 2, 0], sizes = [8, 1, 32], strides = [1, 1, 1]} : vector<8x8x32xf32> to vector<8x1x32xf32>
    %11 = vector.broadcast %10 : vector<8x1x32xf32> to vector<8x8x32xf32>
    %12 = arith.mulf %11, %1 : vector<8x8x32xf32>
    %cst_6 = arith.constant dense<0.000000e+00> : vector<8x8xf32>
    %13 = vector.multi_reduction <add>, %12, %cst_6 [2] : vector<8x8x32xf32> to vector<8x8xf32>
    %14 = vector.extract_strided_slice %0 {offsets = [0, 3, 0], sizes = [8, 1, 32], strides = [1, 1, 1]} : vector<8x8x32xf32> to vector<8x1x32xf32>
    %15 = vector.broadcast %14 : vector<8x1x32xf32> to vector<8x8x32xf32>
    %16 = arith.mulf %15, %1 : vector<8x8x32xf32>
    %cst_7 = arith.constant dense<0.000000e+00> : vector<8x8xf32>
    %17 = vector.multi_reduction <add>, %16, %cst_7 [2] : vector<8x8x32xf32> to vector<8x8xf32>
    %18 = vector.extract_strided_slice %0 {offsets = [0, 4, 0], sizes = [8, 1, 32], strides = [1, 1, 1]} : vector<8x8x32xf32> to vector<8x1x32xf32>
    %19 = vector.broadcast %18 : vector<8x1x32xf32> to vector<8x8x32xf32>
    %20 = arith.mulf %19, %1 : vector<8x8x32xf32>
    %cst_8 = arith.constant dense<0.000000e+00> : vector<8x8xf32>
    %21 = vector.multi_reduction <add>, %20, %cst_8 [2] : vector<8x8x32xf32> to vector<8x8xf32>
    %22 = vector.extract_strided_slice %0 {offsets = [0, 5, 0], sizes = [8, 1, 32], strides = [1, 1, 1]} : vector<8x8x32xf32> to vector<8x1x32xf32>
    %23 = vector.broadcast %22 : vector<8x1x32xf32> to vector<8x8x32xf32>
    %24 = arith.mulf %23, %1 : vector<8x8x32xf32>
    %cst_9 = arith.constant dense<0.000000e+00> : vector<8x8xf32>
    %25 = vector.multi_reduction <add>, %24, %cst_9 [2] : vector<8x8x32xf32> to vector<8x8xf32>
    %26 = vector.extract_strided_slice %0 {offsets = [0, 6, 0], sizes = [8, 1, 32], strides = [1, 1, 1]} : vector<8x8x32xf32> to vector<8x1x32xf32>
    %27 = vector.broadcast %26 : vector<8x1x32xf32> to vector<8x8x32xf32>
    %28 = arith.mulf %27, %1 : vector<8x8x32xf32>
    %cst_10 = arith.constant dense<0.000000e+00> : vector<8x8xf32>
    %29 = vector.multi_reduction <add>, %28, %cst_10 [2] : vector<8x8x32xf32> to vector<8x8xf32>
    %30 = vector.extract_strided_slice %0 {offsets = [0, 7, 0], sizes = [8, 1, 32], strides = [1, 1, 1]} : vector<8x8x32xf32> to vector<8x1x32xf32>
    %31 = vector.broadcast %30 : vector<8x1x32xf32> to vector<8x8x32xf32>
    %32 = arith.mulf %31, %1 : vector<8x8x32xf32>
    %cst_11 = arith.constant dense<0.000000e+00> : vector<8x8xf32>
    %33 = vector.multi_reduction <add>, %32, %cst_11 [2] : vector<8x8x32xf32> to vector<8x8xf32>
    %34 = tpu.concatenate %5, %9, %13, %17, %21, %25, %29, %33 in 1 : vector<8x8xf32>, vector<8x8xf32>, vector<8x8xf32>, vector<8x8xf32>, vector<8x8xf32>, vector<8x8xf32>, vector<8x8xf32>, vector<8x8xf32> -> vector<8x64xf32>
    %c0_12 = arith.constant 0 : index
    %c0_13 = arith.constant 0 : index
    %35 = vector.load %arg3[%c0_12, %c0_13] : memref<8x64xf32, #tpu.memory_space<vmem>>, vector<8x64xf32>
    tpu.vector_store %arg3[%c0_12, %c0_13], %34 {strides = array<i32>} : memref<8x64xf32, #tpu.memory_space<vmem>>, vector<8x64xf32>,
    return
  }
  func.func @transform_0(%arg0: i32) -> (i32, i32, i32) {
    %c0_i32 = arith.constant 0 : i32
    %c0_i32_0 = arith.constant 0 : i32
    %c0_i32_1 = arith.constant 0 : i32
    return %arg0, %c0_i32, %c0_i32_0 : i32, i32, i32
  }
  func.func @transform_1(%arg0: i32) -> (i32, i32, i32) {
    %c0_i32 = arith.constant 0 : i32
    %c0_i32_0 = arith.constant 0 : i32
    %c0_i32_1 = arith.constant 0 : i32
    return %arg0, %c0_i32, %c0_i32_0 : i32, i32, i32
  }
  func.func @transform_2(%arg0: i32) -> (i32, i32) {
    %c0_i32 = arith.constant 0 : i32
    %c0_i32_0 = arith.constant 0 : i32
    return %arg0, %c0_i32 : i32, i32
  }
}

</mosaic_0001>

<llo_original>
// kernel: tpu_custom_call.1
$region0: #{tpu_custom_call.1}
  #allocation0 [shape = 'u32[]', space=smem, size = 0x4, offset = 0x4, fixed_abs, tag = 'smem constant byte address 0x4 - core index']
  #allocation1 [shape = 'u32[144,128]{1,0:T(1,128)}', space=vmem, size = 0x12000, scoped, tag = 'internal scratch']
  %s0 = inlined_call_operand.hbm [shape: f32[8,8,32], index: 0, kind: input, shape index: {}]
  %s1 = inlined_call_operand.hbm [shape: f32[8,8,32], index: 1, kind: input, shape index: {}]
  %s2 = inlined_call_operand.hbm [shape: f32[8,64], index: 2, kind: output, shape index: {}]
  %s3 = sld [smem:[#allocation0]]
  $region26: #{tpu_custom_call.1} parent=0
    _
  %s5 = ssub.s32 1, %s3
  %s6 = scalar_select 0, %s5, %s3
  $region1: #{tpu_custom_call.1} parent=0
    #allocation2 [shape = 'u8[32768]{0}', space=vmem, size = 0x8000, scoped, tag = 'input window, operand 0, single buffered']
    #allocation3 [shape = 's32[1]{0}', space=sflag, size = 0x4, scoped, tag = 'scoped memory for tpu_custom_call.1']
    #allocation4 [shape = 's32[1]{0}', space=sflag, size = 0x4, scoped, tag = 'scoped memory for tpu_custom_call.1']
    #allocation5 [shape = 'u8[32768]{0}', space=vmem, size = 0x8000, scoped, tag = 'input window, operand 1, single buffered']
    #allocation6 [shape = 's32[1]{0}', space=sflag, size = 0x4, scoped, tag = 'scoped memory for tpu_custom_call.1']
    #allocation7 [shape = 'u8[4096]{0}', space=vmem, size = 0x1000, scoped, tag = 'output window, operand 0, single buffered']
    %7 = vsyncpa [#allocation3], 0
    %8 = vsyncpa [#allocation6], 0
    %9 = vsyncpa [#allocation4], 0
    // Predicated region
    $region2: #{tpu_custom_call.1} parent=1 // pred_check
      _
    $region3: #{tpu_custom_call.1} parent=1 // pred_check_branch
      %11 = sbr.rel (0) target = $region5
    $region4: #{tpu_custom_call.1} parent=1 // pred_region
      %s13 = ssub.s32 1024, 1024
      %14 = vsyncadd [#allocation3], %s13
      %s15 = sshll.u32 [#allocation2], 4
      %s16 = int_to_ptr.vmem [resolvable:$true] %s15
      %21 = dma.hbm_to_vmem [thread:$0]  %s0, 1024, %s16, [#allocation3], 128, 128, 8
    $region5: #{tpu_custom_call.1} parent=1 // pred_fallthru
      _
    // Predicated region
    $region6: #{tpu_custom_call.1} parent=1 // pred_check
      _
    $region7: #{tpu_custom_call.1} parent=1 // pred_check_branch
      %23 = sbr.rel (0) target = $region9
    $region8: #{tpu_custom_call.1} parent=1 // pred_region
      %s25 = ssub.s32 1024, 1024
      %26 = vsyncadd [#allocation6], %s25
      %s27 = sshll.u32 [#allocation5], 4
      %s28 = int_to_ptr.vmem [resolvable:$true] %s27
      %33 = dma.hbm_to_vmem [thread:$0]  %s1, 1024, %s28, [#allocation6], 128, 128, 8
    $region9: #{tpu_custom_call.1} parent=1 // pred_fallthru
      _
    // Predicated region
    $region10: #{tpu_custom_call.1} parent=1 // pred_check
      _
    $region11: #{tpu_custom_call.1} parent=1 // pred_check_branch
      %35 = sbr.rel (0) target = $region13
    $region12: #{tpu_custom_call.1} parent=1 // pred_region
      %36 = dma.done [#allocation3], 1024
    $region13: #{tpu_custom_call.1} parent=1 // pred_fallthru
      _
    // Predicated region
    $region14: #{tpu_custom_call.1} parent=1 // pred_check
      _
    $region15: #{tpu_custom_call.1} parent=1 // pred_check_branch
      %38 = sbr.rel (0) target = $region17
    $region16: #{tpu_custom_call.1} parent=1 // pred_region
      %39 = dma.done [#allocation6], 1024
    $region17: #{tpu_custom_call.1} parent=1 // pred_fallthru
      _
    %v40 = vld [vmem:[#allocation2] sm:$0xff]
    %v41 = vld [vmem:[#allocation2 + $0x8] sm:$0xff]
    %v42 = vld [vmem:[#allocation2 + $0x10] sm:$0xff]
    %v43 = vld [vmem:[#allocation2 + $0x18] sm:$0xff]
    %v44 = vld [vmem:[#allocation2 + $0x20] sm:$0xff]
    %v45 = vld [vmem:[#allocation2 + $0x28] sm:$0xff]
    %v46 = vld [vmem:[#allocation2 + $0x30] sm:$0xff]
    %v47 = vld [vmem:[#allocation2 + $0x38] sm:$0xff]
    %v48 = vld [vmem:[#allocation5] sm:$0xff]
    %v49 = vld [vmem:[#allocation5 + $0x8] sm:$0xff]
    %v50 = vld [vmem:[#allocation5 + $0x10] sm:$0xff]
    %v51 = vld [vmem:[#allocation5 + $0x18] sm:$0xff]
    %v52 = vld [vmem:[#allocation5 + $0x20] sm:$0xff]
    %v53 = vld [vmem:[#allocation5 + $0x28] sm:$0xff]
    %v54 = vld [vmem:[#allocation5 + $0x30] sm:$0xff]
    %v55 = vld [vmem:[#allocation5 + $0x38] sm:$0xff]
    %v56 = vlaneseq
    %v57 = vshrl.u32 %v56, 7
    %v58 = vsub.s32 0, %v57
    %v59 = vrot.slane %v40, %v58
    %v60 = vlaneseq
    %v61 = vshrl.u32 %v60, 7
    %v62 = vsub.s32 0, %v61
    %v63 = vrot.slane %v41, %v62
    %v64 = vlaneseq
    %v65 = vshrl.u32 %v64, 7
    %v66 = vsub.s32 0, %v65
    %v67 = vrot.slane %v42, %v66
    %v68 = vlaneseq
    %v69 = vshrl.u32 %v68, 7
    %v70 = vsub.s32 0, %v69
    %v71 = vrot.slane %v43, %v70
    %v72 = vlaneseq
    %v73 = vshrl.u32 %v72, 7
    %v74 = vsub.s32 0, %v73
    %v75 = vrot.slane %v44, %v74
    %v76 = vlaneseq
    %v77 = vshrl.u32 %v76, 7
    %v78 = vsub.s32 0, %v77
    %v79 = vrot.slane %v45, %v78
    %v80 = vlaneseq
    %v81 = vshrl.u32 %v80, 7
    %v82 = vsub.s32 0, %v81
    %v83 = vrot.slane %v46, %v82
    %v84 = vlaneseq
    %v85 = vshrl.u32 %v84, 7
    %v86 = vsub.s32 0, %v85
    %v87 = vrot.slane %v47, %v86
    %v88 = vmul.f32 %v59, %v48
    %v89 = vmul.f32 %v63, %v49
    %v90 = vmul.f32 %v67, %v50
    %v91 = vmul.f32 %v71, %v51
    %v92 = vmul.f32 %v75, %v52
    %v93 = vmul.f32 %v79, %v53
    %v94 = vmul.f32 %v83, %v54
    %v95 = vmul.f32 %v87, %v55
    %vm96 = vcmask 261120
    %v97 = vsel %vm96, %v88, 0.0
    %98 = vadd.xlane.f32.xlu0 %v97
    %v99 = vpop.xlane.xlu0 %98
    %v100 = vsel %vm96, %v89, 0.0
    %101 = vadd.xlane.f32.xlu0 %v100
    %v102 = vpop.xlane.xlu0 %101
    %v103 = vsel %vm96, %v90, 0.0
    %104 = vadd.xlane.f32.xlu0 %v103
    %v105 = vpop.xlane.xlu0 %104
    %v106 = vsel %vm96, %v91, 0.0
    %107 = vadd.xlane.f32.xlu0 %v106
    %v108 = vpop.xlane.xlu0 %107
    %v109 = vsel %vm96, %v92, 0.0
    %110 = vadd.xlane.f32.xlu0 %v109
    %v111 = vpop.xlane.xlu0 %110
    %v112 = vsel %vm96, %v93, 0.0
    %113 = vadd.xlane.f32.xlu0 %v112
    %v114 = vpop.xlane.xlu0 %113
    %v115 = vsel %vm96, %v94, 0.0
    %116 = vadd.xlane.f32.xlu0 %v115
    %v117 = vpop.xlane.xlu0 %116
    %v118 = vsel %vm96, %v95, 0.0
    %119 = vadd.xlane.f32.xlu0 %v118
    %v120 = vpop.xlane.xlu0 %119
    %v121 = vlaneseq
    %v122 = vshrl.u32 %v121, 7
    %v123 = vsub.s32 1, %v122
    %v124 = vrot.slane %v40, %v123
    %v125 = vlaneseq
    %v126 = vshrl.u32 %v125, 7
    %v127 = vsub.s32 1, %v126
    %v128 = vrot.slane %v41, %v127
    %v129 = vlaneseq
    %v130 = vshrl.u32 %v129, 7
    %v131 = vsub.s32 1, %v130
    %v132 = vrot.slane %v42, %v131
    %v133 = vlaneseq
    %v134 = vshrl.u32 %v133, 7
    %v135 = vsub.s32 1, %v134
    %v136 = vrot.slane %v43, %v135
    %v137 = vlaneseq
    %v138 = vshrl.u32 %v137, 7
    %v139 = vsub.s32 1, %v138
    %v140 = vrot.slane %v44, %v139
    %v141 = vlaneseq
    %v142 = vshrl.u32 %v141, 7
    %v143 = vsub.s32 1, %v142
    %v144 = vrot.slane %v45, %v143
    %v145 = vlaneseq
    %v146 = vshrl.u32 %v145, 7
    %v147 = vsub.s32 1, %v146
    %v148 = vrot.slane %v46, %v147
    %v149 = vlaneseq
    %v150 = vshrl.u32 %v149, 7
    %v151 = vsub.s32 1, %v150
    %v152 = vrot.slane %v47, %v151
    %v153 = vmul.f32 %v124, %v48
    %v154 = vmul.f32 %v128, %v49
    %v155 = vmul.f32 %v132, %v50
    %v156 = vmul.f32 %v136, %v51
    %v157 = vmul.f32 %v140, %v52
    %v158 = vmul.f32 %v144, %v53
    %v159 = vmul.f32 %v148, %v54
    %v160 = vmul.f32 %v152, %v55
    %v161 = vsel %vm96, %v153, 0.0
    %162 = vadd.xlane.f32.xlu0 %v161
    %v163 = vpop.xlane.xlu0 %162
    %v164 = vsel %vm96, %v154, 0.0
    %165 = vadd.xlane.f32.xlu0 %v164
    %v166 = vpop.xlane.xlu0 %165
    %v167 = vsel %vm96, %v155, 0.0
    %168 = vadd.xlane.f32.xlu0 %v167
    %v169 = vpop.xlane.xlu0 %168
    %v170 = vsel %vm96, %v156, 0.0
    %171 = vadd.xlane.f32.xlu0 %v170
    %v172 = vpop.xlane.xlu0 %171
    %v173 = vsel %vm96, %v157, 0.0
    %174 = vadd.xlane.f32.xlu0 %v173
    %v175 = vpop.xlane.xlu0 %174
    %v176 = vsel %vm96, %v158, 0.0
    %177 = vadd.xlane.f32.xlu0 %v176
    %v178 = vpop.xlane.xlu0 %177
    %v179 = vsel %vm96, %v159, 0.0
    %180 = vadd.xlane.f32.xlu0 %v179
    %v181 = vpop.xlane.xlu0 %180
    %v182 = vsel %vm96, %v160, 0.0
    %183 = vadd.xlane.f32.xlu0 %v182
    %v184 = vpop.xlane.xlu0 %183
    %v185 = vlaneseq
    %v186 = vshrl.u32 %v185, 7
    %v187 = vsub.s32 2, %v186
    %v188 = vrot.slane %v40, %v187
    %v189 = vlaneseq
    %v190 = vshrl.u32 %v189, 7
    %v191 = vsub.s32 2, %v190
    %v192 = vrot.slane %v41, %v191
    %v193 = vlaneseq
    %v194 = vshrl.u32 %v193, 7
    %v195 = vsub.s32 2, %v194
    %v196 = vrot.slane %v42, %v195
    %v197 = vlaneseq
    %v198 = vshrl.u32 %v197, 7
    %v199 = vsub.s32 2, %v198
    %v200 = vrot.slane %v43, %v199
    %v201 = vlaneseq
    %v202 = vshrl.u32 %v201, 7
    %v203 = vsub.s32 2, %v202
    %v204 = vrot.slane %v44, %v203
    %v205 = vlaneseq
    %v206 = vshrl.u32 %v205, 7
    %v207 = vsub.s32 2, %v206
    %v208 = vrot.slane %v45, %v207
    %v209 = vlaneseq
    %v210 = vshrl.u32 %v209, 7
    %v211 = vsub.s32 2, %v210
    %v212 = vrot.slane %v46, %v211
    %v213 = vlaneseq
    %v214 = vshrl.u32 %v213, 7
    %v215 = vsub.s32 2, %v214
    %v216 = vrot.slane %v47, %v215
    %v217 = vmul.f32 %v188, %v48
    %v218 = vmul.f32 %v192, %v49
    %v219 = vmul.f32 %v196, %v50
    %v220 = vmul.f32 %v200, %v51
    %v221 = vmul.f32 %v204, %v52
    %v222 = vmul.f32 %v208, %v53
    %v223 = vmul.f32 %v212, %v54
    %v224 = vmul.f32 %v216, %v55
    %v225 = vsel %vm96, %v217, 0.0
    %226 = vadd.xlane.f32.xlu0 %v225
    %v227 = vpop.xlane.xlu0 %226
    %v228 = vsel %vm96, %v218, 0.0
    %229 = vadd.xlane.f32.xlu0 %v228
    %v230 = vpop.xlane.xlu0 %229
    %v231 = vsel %vm96, %v219, 0.0
    %232 = vadd.xlane.f32.xlu0 %v231
    %v233 = vpop.xlane.xlu0 %232
    %v234 = vsel %vm96, %v220, 0.0
    %235 = vadd.xlane.f32.xlu0 %v234
    %v236 = vpop.xlane.xlu0 %235
    %v237 = vsel %vm96, %v221, 0.0
    %238 = vadd.xlane.f32.xlu0 %v237
    %v239 = vpop.xlane.xlu0 %238
    %v240 = vsel %vm96, %v222, 0.0
    %241 = vadd.xlane.f32.xlu0 %v240
    %v242 = vpop.xlane.xlu0 %241
    %v243 = vsel %vm96, %v223, 0.0
    %244 = vadd.xlane.f32.xlu0 %v243
    %v245 = vpop.xlane.xlu0 %244
    %v246 = vsel %vm96, %v224, 0.0
    %247 = vadd.xlane.f32.xlu0 %v246
    %v248 = vpop.xlane.xlu0 %247
    %v249 = vlaneseq
    %v250 = vshrl.u32 %v249, 7
    %v251 = vsub.s32 3, %v250
    %v252 = vrot.slane %v40, %v251
    %v253 = vlaneseq
    %v254 = vshrl.u32 %v253, 7
    %v255 = vsub.s32 3, %v254
    %v256 = vrot.slane %v41, %v255
    %v257 = vlaneseq
    %v258 = vshrl.u32 %v257, 7
    %v259 = vsub.s32 3, %v258
    %v260 = vrot.slane %v42, %v259
    %v261 = vlaneseq
    %v262 = vshrl.u32 %v261, 7
    %v263 = vsub.s32 3, %v262
    %v264 = vrot.slane %v43, %v263
    %v265 = vlaneseq
    %v266 = vshrl.u32 %v265, 7
    %v267 = vsub.s32 3, %v266
    %v268 = vrot.slane %v44, %v267
    %v269 = vlaneseq
    %v270 = vshrl.u32 %v269, 7
    %v271 = vsub.s32 3, %v270
    %v272 = vrot.slane %v45, %v271
    %v273 = vlaneseq
    %v274 = vshrl.u32 %v273, 7
    %v275 = vsub.s32 3, %v274
    %v276 = vrot.slane %v46, %v275
    %v277 = vlaneseq
    %v278 = vshrl.u32 %v277, 7
    %v279 = vsub.s32 3, %v278
    %v280 = vrot.slane %v47, %v279
    %v281 = vmul.f32 %v252, %v48
    %v282 = vmul.f32 %v256, %v49
    %v283 = vmul.f32 %v260, %v50
    %v284 = vmul.f32 %v264, %v51
    %v285 = vmul.f32 %v268, %v52
    %v286 = vmul.f32 %v272, %v53
    %v287 = vmul.f32 %v276, %v54
    %v288 = vmul.f32 %v280, %v55
    %v289 = vsel %vm96, %v281, 0.0
    %290 = vadd.xlane.f32.xlu0 %v289
    %v291 = vpop.xlane.xlu0 %290
    %v292 = vsel %vm96, %v282, 0.0
    %293 = vadd.xlane.f32.xlu0 %v292
    %v294 = vpop.xlane.xlu0 %293
    %v295 = vsel %vm96, %v283, 0.0
    %296 = vadd.xlane.f32.xlu0 %v295
    %v297 = vpop.xlane.xlu0 %296
    %v298 = vsel %vm96, %v284, 0.0
    %299 = vadd.xlane.f32.xlu0 %v298
    %v300 = vpop.xlane.xlu0 %299
    %v301 = vsel %vm96, %v285, 0.0
    %302 = vadd.xlane.f32.xlu0 %v301
    %v303 = vpop.xlane.xlu0 %302
    %v304 = vsel %vm96, %v286, 0.0
    %305 = vadd.xlane.f32.xlu0 %v304
    %v306 = vpop.xlane.xlu0 %305
    %v307 = vsel %vm96, %v287, 0.0
    %308 = vadd.xlane.f32.xlu0 %v307
    %v309 = vpop.xlane.xlu0 %308
    %v310 = vsel %vm96, %v288, 0.0
    %311 = vadd.xlane.f32.xlu0 %v310
    %v312 = vpop.xlane.xlu0 %311
    %v313 = vlaneseq
    %v314 = vshrl.u32 %v313, 7
    %v315 = vsub.s32 4, %v314
    %v316 = vrot.slane %v40, %v315
    %v317 = vlaneseq
    %v318 = vshrl.u32 %v317, 7
    %v319 = vsub.s32 4, %v318
    %v320 = vrot.slane %v41, %v319
    %v321 = vlaneseq
    %v322 = vshrl.u32 %v321, 7
    %v323 = vsub.s32 4, %v322
    %v324 = vrot.slane %v42, %v323
    %v325 = vlaneseq
    %v326 = vshrl.u32 %v325, 7
    %v327 = vsub.s32 4, %v326
    %v328 = vrot.slane %v43, %v327
    %v329 = vlaneseq
    %v330 = vshrl.u32 %v329, 7
    %v331 = vsub.s32 4, %v330
    %v332 = vrot.slane %v44, %v331
    %v333 = vlaneseq
    %v334 = vshrl.u32 %v333, 7
    %v335 = vsub.s32 4, %v334
    %v336 = vrot.slane %v45, %v335
    %v337 = vlaneseq
    %v338 = vshrl.u32 %v337, 7
    %v339 = vsub.s32 4, %v338
    %v340 = vrot.slane %v46, %v339
    %v341 = vlaneseq
    %v342 = vshrl.u32 %v341, 7
    %v343 = vsub.s32 4, %v342
    %v344 = vrot.slane %v47, %v343
    %v345 = vmul.f32 %v316, %v48
    %v346 = vmul.f32 %v320, %v49
    %v347 = vmul.f32 %v324, %v50
    %v348 = vmul.f32 %v328, %v51
    %v349 = vmul.f32 %v332, %v52
    %v350 = vmul.f32 %v336, %v53
    %v351 = vmul.f32 %v340, %v54
    %v352 = vmul.f32 %v344, %v55
    %v353 = vsel %vm96, %v345, 0.0
    %354 = vadd.xlane.f32.xlu0 %v353
    %v355 = vpop.xlane.xlu0 %354
    %v356 = vsel %vm96, %v346, 0.0
    %357 = vadd.xlane.f32.xlu0 %v356
    %v358 = vpop.xlane.xlu0 %357
    %v359 = vsel %vm96, %v347, 0.0
    %360 = vadd.xlane.f32.xlu0 %v359
    %v361 = vpop.xlane.xlu0 %360
    %v362 = vsel %vm96, %v348, 0.0
    %363 = vadd.xlane.f32.xlu0 %v362
    %v364 = vpop.xlane.xlu0 %363
    %v365 = vsel %vm96, %v349, 0.0
    %366 = vadd.xlane.f32.xlu0 %v365
    %v367 = vpop.xlane.xlu0 %366
    %v368 = vsel %vm96, %v350, 0.0
    %369 = vadd.xlane.f32.xlu0 %v368
    %v370 = vpop.xlane.xlu0 %369
    %v371 = vsel %vm96, %v351, 0.0
    %372 = vadd.xlane.f32.xlu0 %v371
    %v373 = vpop.xlane.xlu0 %372
    %v374 = vsel %vm96, %v352, 0.0
    %375 = vadd.xlane.f32.xlu0 %v374
    %v376 = vpop.xlane.xlu0 %375
    %v377 = vlaneseq
    %v378 = vshrl.u32 %v377, 7
    %v379 = vsub.s32 5, %v378
    %v380 = vrot.slane %v40, %v379
    %v381 = vlaneseq
    %v382 = vshrl.u32 %v381, 7
    %v383 = vsub.s32 5, %v382
    %v384 = vrot.slane %v41, %v383
    %v385 = vlaneseq
    %v386 = vshrl.u32 %v385, 7
    %v387 = vsub.s32 5, %v386
    %v388 = vrot.slane %v42, %v387
    %v389 = vlaneseq
    %v390 = vshrl.u32 %v389, 7
    %v391 = vsub.s32 5, %v390
    %v392 = vrot.slane %v43, %v391
    %v393 = vlaneseq
    %v394 = vshrl.u32 %v393, 7
    %v395 = vsub.s32 5, %v394
    %v396 = vrot.slane %v44, %v395
    %v397 = vlaneseq
    %v398 = vshrl.u32 %v397, 7
    %v399 = vsub.s32 5, %v398
    %v400 = vrot.slane %v45, %v399
    %v401 = vlaneseq
    %v402 = vshrl.u32 %v401, 7
    %v403 = vsub.s32 5, %v402
    %v404 = vrot.slane %v46, %v403
    %v405 = vlaneseq
    %v406 = vshrl.u32 %v405, 7
    %v407 = vsub.s32 5, %v406
    %v408 = vrot.slane %v47, %v407
    %v409 = vmul.f32 %v380, %v48
    %v410 = vmul.f32 %v384, %v49
    %v411 = vmul.f32 %v388, %v50
    %v412 = vmul.f32 %v392, %v51
    %v413 = vmul.f32 %v396, %v52
    %v414 = vmul.f32 %v400, %v53
    %v415 = vmul.f32 %v404, %v54
    %v416 = vmul.f32 %v408, %v55
    %v417 = vsel %vm96, %v409, 0.0
    %418 = vadd.xlane.f32.xlu0 %v417
    %v419 = vpop.xlane.xlu0 %418
    %v420 = vsel %vm96, %v410, 0.0
    %421 = vadd.xlane.f32.xlu0 %v420
    %v422 = vpop.xlane.xlu0 %421
    %v423 = vsel %vm96, %v411, 0.0
    %424 = vadd.xlane.f32.xlu0 %v423
    %v425 = vpop.xlane.xlu0 %424
    %v426 = vsel %vm96, %v412, 0.0
    %427 = vadd.xlane.f32.xlu0 %v426
    %v428 = vpop.xlane.xlu0 %427
    %v429 = vsel %vm96, %v413, 0.0
    %430 = vadd.xlane.f32.xlu0 %v429
    %v431 = vpop.xlane.xlu0 %430
    %v432 = vsel %vm96, %v414, 0.0
    %433 = vadd.xlane.f32.xlu0 %v432
    %v434 = vpop.xlane.xlu0 %433
    %v435 = vsel %vm96, %v415, 0.0
    %436 = vadd.xlane.f32.xlu0 %v435
    %v437 = vpop.xlane.xlu0 %436
    %v438 = vsel %vm96, %v416, 0.0
    %439 = vadd.xlane.f32.xlu0 %v438
    %v440 = vpop.xlane.xlu0 %439
    %v441 = vlaneseq
    %v442 = vshrl.u32 %v441, 7
    %v443 = vsub.s32 6, %v442
    %v444 = vrot.slane %v40, %v443
    %v445 = vlaneseq
    %v446 = vshrl.u32 %v445, 7
    %v447 = vsub.s32 6, %v446
    %v448 = vrot.slane %v41, %v447
    %v449 = vlaneseq
    %v450 = vshrl.u32 %v449, 7
    %v451 = vsub.s32 6, %v450
    %v452 = vrot.slane %v42, %v451
    %v453 = vlaneseq
    %v454 = vshrl.u32 %v453, 7
    %v455 = vsub.s32 6, %v454
    %v456 = vrot.slane %v43, %v455
    %v457 = vlaneseq
    %v458 = vshrl.u32 %v457, 7
    %v459 = vsub.s32 6, %v458
    %v460 = vrot.slane %v44, %v459
    %v461 = vlaneseq
    %v462 = vshrl.u32 %v461, 7
    %v463 = vsub.s32 6, %v462
    %v464 = vrot.slane %v45, %v463
    %v465 = vlaneseq
    %v466 = vshrl.u32 %v465, 7
    %v467 = vsub.s32 6, %v466
    %v468 = vrot.slane %v46, %v467
    %v469 = vlaneseq
    %v470 = vshrl.u32 %v469, 7
    %v471 = vsub.s32 6, %v470
    %v472 = vrot.slane %v47, %v471
    %v473 = vmul.f32 %v444, %v48
    %v474 = vmul.f32 %v448, %v49
    %v475 = vmul.f32 %v452, %v50
    %v476 = vmul.f32 %v456, %v51
    %v477 = vmul.f32 %v460, %v52
    %v478 = vmul.f32 %v464, %v53
    %v479 = vmul.f32 %v468, %v54
    %v480 = vmul.f32 %v472, %v55
    %v481 = vsel %vm96, %v473, 0.0
    %482 = vadd.xlane.f32.xlu0 %v481
    %v483 = vpop.xlane.xlu0 %482
    %v484 = vsel %vm96, %v474, 0.0
    %485 = vadd.xlane.f32.xlu0 %v484
    %v486 = vpop.xlane.xlu0 %485
    %v487 = vsel %vm96, %v475, 0.0
    %488 = vadd.xlane.f32.xlu0 %v487
    %v489 = vpop.xlane.xlu0 %488
    %v490 = vsel %vm96, %v476, 0.0
    %491 = vadd.xlane.f32.xlu0 %v490
    %v492 = vpop.xlane.xlu0 %491
    %v493 = vsel %vm96, %v477, 0.0
    %494 = vadd.xlane.f32.xlu0 %v493
    %v495 = vpop.xlane.xlu0 %494
    %v496 = vsel %vm96, %v478, 0.0
    %497 = vadd.xlane.f32.xlu0 %v496
    %v498 = vpop.xlane.xlu0 %497
    %v499 = vsel %vm96, %v479, 0.0
    %500 = vadd.xlane.f32.xlu0 %v499
    %v501 = vpop.xlane.xlu0 %500
    %v502 = vsel %vm96, %v480, 0.0
    %503 = vadd.xlane.f32.xlu0 %v502
    %v504 = vpop.xlane.xlu0 %503
    %v505 = vlaneseq
    %v506 = vshrl.u32 %v505, 7
    %v507 = vsub.s32 7, %v506
    %v508 = vrot.slane %v40, %v507
    %v509 = vlaneseq
    %v510 = vshrl.u32 %v509, 7
    %v511 = vsub.s32 7, %v510
    %v512 = vrot.slane %v41, %v511
    %v513 = vlaneseq
    %v514 = vshrl.u32 %v513, 7
    %v515 = vsub.s32 7, %v514
    %v516 = vrot.slane %v42, %v515
    %v517 = vlaneseq
    %v518 = vshrl.u32 %v517, 7
    %v519 = vsub.s32 7, %v518
    %v520 = vrot.slane %v43, %v519
    %v521 = vlaneseq
    %v522 = vshrl.u32 %v521, 7
    %v523 = vsub.s32 7, %v522
    %v524 = vrot.slane %v44, %v523
    %v525 = vlaneseq
    %v526 = vshrl.u32 %v525, 7
    %v527 = vsub.s32 7, %v526
    %v528 = vrot.slane %v45, %v527
    %v529 = vlaneseq
    %v530 = vshrl.u32 %v529, 7
    %v531 = vsub.s32 7, %v530
    %v532 = vrot.slane %v46, %v531
    %v533 = vlaneseq
    %v534 = vshrl.u32 %v533, 7
    %v535 = vsub.s32 7, %v534
    %v536 = vrot.slane %v47, %v535
    %v537 = vmul.f32 %v508, %v48
    %v538 = vmul.f32 %v512, %v49
    %v539 = vmul.f32 %v516, %v50
    %v540 = vmul.f32 %v520, %v51
    %v541 = vmul.f32 %v524, %v52
    %v542 = vmul.f32 %v528, %v53
    %v543 = vmul.f32 %v532, %v54
    %v544 = vmul.f32 %v536, %v55
    %v545 = vsel %vm96, %v537, 0.0
    %546 = vadd.xlane.f32.xlu0 %v545
    %v547 = vpop.xlane.xlu0 %546
    %v548 = vsel %vm96, %v538, 0.0
    %549 = vadd.xlane.f32.xlu0 %v548
    %v550 = vpop.xlane.xlu0 %549
    %v551 = vsel %vm96, %v539, 0.0
    %552 = vadd.xlane.f32.xlu0 %v551
    %v553 = vpop.xlane.xlu0 %552
    %v554 = vsel %vm96, %v540, 0.0
    %555 = vadd.xlane.f32.xlu0 %v554
    %v556 = vpop.xlane.xlu0 %555
    %v557 = vsel %vm96, %v541, 0.0
    %558 = vadd.xlane.f32.xlu0 %v557
    %v559 = vpop.xlane.xlu0 %558
    %v560 = vsel %vm96, %v542, 0.0
    %561 = vadd.xlane.f32.xlu0 %v560
    %v562 = vpop.xlane.xlu0 %561
    %v563 = vsel %vm96, %v543, 0.0
    %564 = vadd.xlane.f32.xlu0 %v563
    %v565 = vpop.xlane.xlu0 %564
    %v566 = vsel %vm96, %v544, 0.0
    %567 = vadd.xlane.f32.xlu0 %v566
    %v568 = vpop.xlane.xlu0 %567
    %v577 = vlaneseq
    %v578 = vand.u32 %v577, 127
    %v579 = vlaneseq
    %v580 = vshrl.u32 %v579, 7
    %v581 = vsub.s32 %v578, %v580
    %v582 = vrot.slane %v99, %v581
    %v583 = vlaneseq
    %v584 = vshrl.u32 %v583, 7
    %v585 = vsub.s32 %v578, %v584
    %v586 = vrot.slane %v102, %v585
    %v587 = vlaneseq
    %v588 = vshrl.u32 %v587, 7
    %v589 = vsub.s32 %v578, %v588
    %v590 = vrot.slane %v105, %v589
    %v591 = vlaneseq
    %v592 = vshrl.u32 %v591, 7
    %v593 = vsub.s32 %v578, %v592
    %v594 = vrot.slane %v108, %v593
    %v595 = vlaneseq
    %v596 = vshrl.u32 %v595, 7
    %v597 = vsub.s32 %v578, %v596
    %v598 = vrot.slane %v111, %v597
    %v599 = vlaneseq
    %v600 = vshrl.u32 %v599, 7
    %v601 = vsub.s32 %v578, %v600
    %v602 = vrot.slane %v114, %v601
    %v603 = vlaneseq
    %v604 = vshrl.u32 %v603, 7
    %v605 = vsub.s32 %v578, %v604
    %v606 = vrot.slane %v117, %v605
    %v607 = vlaneseq
    %v608 = vshrl.u32 %v607, 7
    %v609 = vsub.s32 %v578, %v608
    %v610 = vrot.slane %v120, %v609
    %vm611 = vcmask 1041409
    %v612 = vsel %vm611, %v586, %v582
    %vm613 = vcmask 1042434
    %v614 = vsel %vm613, %v590, %v612
    %vm615 = vcmask 1043459
    %v616 = vsel %vm615, %v594, %v614
    %vm617 = vcmask 1044484
    %v618 = vsel %vm617, %v598, %v616
    %vm619 = vcmask 1045509
    %v620 = vsel %vm619, %v602, %v618
    %vm621 = vcmask 1046534
    %v622 = vsel %vm621, %v606, %v620
    %vm623 = vcmask 1047559
    %v624 = vsel %vm623, %v610, %v622
    %v634 = vadd.s32 %v578, 4294967288
    %v635 = vlaneseq
    %v636 = vshrl.u32 %v635, 7
    %v637 = vsub.s32 %v634, %v636
    %v638 = vrot.slane %v163, %v637
    %v639 = vlaneseq
    %v640 = vshrl.u32 %v639, 7
    %v641 = vsub.s32 %v634, %v640
    %v642 = vrot.slane %v166, %v641
    %v643 = vlaneseq
    %v644 = vshrl.u32 %v643, 7
    %v645 = vsub.s32 %v634, %v644
    %v646 = vrot.slane %v169, %v645
    %v647 = vlaneseq
    %v648 = vshrl.u32 %v647, 7
    %v649 = vsub.s32 %v634, %v648
    %v650 = vrot.slane %v172, %v649
    %v651 = vlaneseq
    %v652 = vshrl.u32 %v651, 7
    %v653 = vsub.s32 %v634, %v652
    %v654 = vrot.slane %v175, %v653
    %v655 = vlaneseq
    %v656 = vshrl.u32 %v655, 7
    %v657 = vsub.s32 %v634, %v656
    %v658 = vrot.slane %v178, %v657
    %v659 = vlaneseq
    %v660 = vshrl.u32 %v659, 7
    %v661 = vsub.s32 %v634, %v660
    %v662 = vrot.slane %v181, %v661
    %v663 = vlaneseq
    %v664 = vshrl.u32 %v663, 7
    %v665 = vsub.s32 %v634, %v664
    %v666 = vrot.slane %v184, %v665
    %v667 = vsel %vm611, %v642, %v638
    %v668 = vsel %vm613, %v646, %v667
    %v669 = vsel %vm615, %v650, %v668
    %v670 = vsel %vm617, %v654, %v669
    %v671 = vsel %vm619, %v658, %v670
    %v672 = vsel %vm621, %v662, %v671
    %v673 = vsel %vm623, %v666, %v672
    %v683 = vadd.s32 %v578, 4294967280
    %v684 = vlaneseq
    %v685 = vshrl.u32 %v684, 7
    %v686 = vsub.s32 %v683, %v685
    %v687 = vrot.slane %v227, %v686
    %v688 = vlaneseq
    %v689 = vshrl.u32 %v688, 7
    %v690 = vsub.s32 %v683, %v689
    %v691 = vrot.slane %v230, %v690
    %v692 = vlaneseq
    %v693 = vshrl.u32 %v692, 7
    %v694 = vsub.s32 %v683, %v693
    %v695 = vrot.slane %v233, %v694
    %v696 = vlaneseq
    %v697 = vshrl.u32 %v696, 7
    %v698 = vsub.s32 %v683, %v697
    %v699 = vrot.slane %v236, %v698
    %v700 = vlaneseq
    %v701 = vshrl.u32 %v700, 7
    %v702 = vsub.s32 %v683, %v701
    %v703 = vrot.slane %v239, %v702
    %v704 = vlaneseq
    %v705 = vshrl.u32 %v704, 7
    %v706 = vsub.s32 %v683, %v705
    %v707 = vrot.slane %v242, %v706
    %v708 = vlaneseq
    %v709 = vshrl.u32 %v708, 7
    %v710 = vsub.s32 %v683, %v709
    %v711 = vrot.slane %v245, %v710
    %v712 = vlaneseq
    %v713 = vshrl.u32 %v712, 7
    %v714 = vsub.s32 %v683, %v713
    %v715 = vrot.slane %v248, %v714
    %v716 = vsel %vm611, %v691, %v687
    %v717 = vsel %vm613, %v695, %v716
    %v718 = vsel %vm615, %v699, %v717
    %v719 = vsel %vm617, %v703, %v718
    %v720 = vsel %vm619, %v707, %v719
    %v721 = vsel %vm621, %v711, %v720
    %v722 = vsel %vm623, %v715, %v721
    %v732 = vadd.s32 %v578, 4294967272
    %v733 = vlaneseq
    %v734 = vshrl.u32 %v733, 7
    %v735 = vsub.s32 %v732, %v734
    %v736 = vrot.slane %v291, %v735
    %v737 = vlaneseq
    %v738 = vshrl.u32 %v737, 7
    %v739 = vsub.s32 %v732, %v738
    %v740 = vrot.slane %v294, %v739
    %v741 = vlaneseq
    %v742 = vshrl.u32 %v741, 7
    %v743 = vsub.s32 %v732, %v742
    %v744 = vrot.slane %v297, %v743
    %v745 = vlaneseq
    %v746 = vshrl.u32 %v745, 7
    %v747 = vsub.s32 %v732, %v746
    %v748 = vrot.slane %v300, %v747
    %v749 = vlaneseq
    %v750 = vshrl.u32 %v749, 7
    %v751 = vsub.s32 %v732, %v750
    %v752 = vrot.slane %v303, %v751
    %v753 = vlaneseq
    %v754 = vshrl.u32 %v753, 7
    %v755 = vsub.s32 %v732, %v754
    %v756 = vrot.slane %v306, %v755
    %v757 = vlaneseq
    %v758 = vshrl.u32 %v757, 7
    %v759 = vsub.s32 %v732, %v758
    %v760 = vrot.slane %v309, %v759
    %v761 = vlaneseq
    %v762 = vshrl.u32 %v761, 7
    %v763 = vsub.s32 %v732, %v762
    %v764 = vrot.slane %v312, %v763
    %v765 = vsel %vm611, %v740, %v736
    %v766 = vsel %vm613, %v744, %v765
    %v767 = vsel %vm615, %v748, %v766
    %v768 = vsel %vm617, %v752, %v767
    %v769 = vsel %vm619, %v756, %v768
    %v770 = vsel %vm621, %v760, %v769
    %v771 = vsel %vm623, %v764, %v770
    %v781 = vadd.s32 %v578, 4294967264
    %v782 = vlaneseq
    %v783 = vshrl.u32 %v782, 7
    %v784 = vsub.s32 %v781, %v783
    %v785 = vrot.slane %v355, %v784
    %v786 = vlaneseq
    %v787 = vshrl.u32 %v786, 7
    %v788 = vsub.s32 %v781, %v787
    %v789 = vrot.slane %v358, %v788
    %v790 = vlaneseq
    %v791 = vshrl.u32 %v790, 7
    %v792 = vsub.s32 %v781, %v791
    %v793 = vrot.slane %v361, %v792
    %v794 = vlaneseq
    %v795 = vshrl.u32 %v794, 7
    %v796 = vsub.s32 %v781, %v795
    %v797 = vrot.slane %v364, %v796
    %v798 = vlaneseq
    %v799 = vshrl.u32 %v798, 7
    %v800 = vsub.s32 %v781, %v799
    %v801 = vrot.slane %v367, %v800
    %v802 = vlaneseq
    %v803 = vshrl.u32 %v802, 7
    %v804 = vsub.s32 %v781, %v803
    %v805 = vrot.slane %v370, %v804
    %v806 = vlaneseq
    %v807 = vshrl.u32 %v806, 7
    %v808 = vsub.s32 %v781, %v807
    %v809 = vrot.slane %v373, %v808
    %v810 = vlaneseq
    %v811 = vshrl.u32 %v810, 7
    %v812 = vsub.s32 %v781, %v811
    %v813 = vrot.slane %v376, %v812
    %v814 = vsel %vm611, %v789, %v785
    %v815 = vsel %vm613, %v793, %v814
    %v816 = vsel %vm615, %v797, %v815
    %v817 = vsel %vm617, %v801, %v816
    %v818 = vsel %vm619, %v805, %v817
    %v819 = vsel %vm621, %v809, %v818
    %v820 = vsel %vm623, %v813, %v819
    %v830 = vadd.s32 %v578, 4294967256
    %v831 = vlaneseq
    %v832 = vshrl.u32 %v831, 7
    %v833 = vsub.s32 %v830, %v832
    %v834 = vrot.slane %v419, %v833
    %v835 = vlaneseq
    %v836 = vshrl.u32 %v835, 7
    %v837 = vsub.s32 %v830, %v836
    %v838 = vrot.slane %v422, %v837
    %v839 = vlaneseq
    %v840 = vshrl.u32 %v839, 7
    %v841 = vsub.s32 %v830, %v840
    %v842 = vrot.slane %v425, %v841
    %v843 = vlaneseq
    %v844 = vshrl.u32 %v843, 7
    %v845 = vsub.s32 %v830, %v844
    %v846 = vrot.slane %v428, %v845
    %v847 = vlaneseq
    %v848 = vshrl.u32 %v847, 7
    %v849 = vsub.s32 %v830, %v848
    %v850 = vrot.slane %v431, %v849
    %v851 = vlaneseq
    %v852 = vshrl.u32 %v851, 7
    %v853 = vsub.s32 %v830, %v852
    %v854 = vrot.slane %v434, %v853
    %v855 = vlaneseq
    %v856 = vshrl.u32 %v855, 7
    %v857 = vsub.s32 %v830, %v856
    %v858 = vrot.slane %v437, %v857
    %v859 = vlaneseq
    %v860 = vshrl.u32 %v859, 7
    %v861 = vsub.s32 %v830, %v860
    %v862 = vrot.slane %v440, %v861
    %v863 = vsel %vm611, %v838, %v834
    %v864 = vsel %vm613, %v842, %v863
    %v865 = vsel %vm615, %v846, %v864
    %v866 = vsel %vm617, %v850, %v865
    %v867 = vsel %vm619, %v854, %v866
    %v868 = vsel %vm621, %v858, %v867
    %v869 = vsel %vm623, %v862, %v868
    %v879 = vadd.s32 %v578, 4294967248
    %v880 = vlaneseq
    %v881 = vshrl.u32 %v880, 7
    %v882 = vsub.s32 %v879, %v881
    %v883 = vrot.slane %v483, %v882
    %v884 = vlaneseq
    %v885 = vshrl.u32 %v884, 7
    %v886 = vsub.s32 %v879, %v885
    %v887 = vrot.slane %v486, %v886
    %v888 = vlaneseq
    %v889 = vshrl.u32 %v888, 7
    %v890 = vsub.s32 %v879, %v889
    %v891 = vrot.slane %v489, %v890
    %v892 = vlaneseq
    %v893 = vshrl.u32 %v892, 7
    %v894 = vsub.s32 %v879, %v893
    %v895 = vrot.slane %v492, %v894
    %v896 = vlaneseq
    %v897 = vshrl.u32 %v896, 7
    %v898 = vsub.s32 %v879, %v897
    %v899 = vrot.slane %v495, %v898
    %v900 = vlaneseq
    %v901 = vshrl.u32 %v900, 7
    %v902 = vsub.s32 %v879, %v901
    %v903 = vrot.slane %v498, %v902
    %v904 = vlaneseq
    %v905 = vshrl.u32 %v904, 7
    %v906 = vsub.s32 %v879, %v905
    %v907 = vrot.slane %v501, %v906
    %v908 = vlaneseq
    %v909 = vshrl.u32 %v908, 7
    %v910 = vsub.s32 %v879, %v909
    %v911 = vrot.slane %v504, %v910
    %v912 = vsel %vm611, %v887, %v883
    %v913 = vsel %vm613, %v891, %v912
    %v914 = vsel %vm615, %v895, %v913
    %v915 = vsel %vm617, %v899, %v914
    %v916 = vsel %vm619, %v903, %v915
    %v917 = vsel %vm621, %v907, %v916
    %v918 = vsel %vm623, %v911, %v917
    %v928 = vadd.s32 %v578, 4294967240
    %v929 = vlaneseq
    %v930 = vshrl.u32 %v929, 7
    %v931 = vsub.s32 %v928, %v930
    %v932 = vrot.slane %v547, %v931
    %v933 = vlaneseq
    %v934 = vshrl.u32 %v933, 7
    %v935 = vsub.s32 %v928, %v934
    %v936 = vrot.slane %v550, %v935
    %v937 = vlaneseq
    %v938 = vshrl.u32 %v937, 7
    %v939 = vsub.s32 %v928, %v938
    %v940 = vrot.slane %v553, %v939
    %v941 = vlaneseq
    %v942 = vshrl.u32 %v941, 7
    %v943 = vsub.s32 %v928, %v942
    %v944 = vrot.slane %v556, %v943
    %v945 = vlaneseq
    %v946 = vshrl.u32 %v945, 7
    %v947 = vsub.s32 %v928, %v946
    %v948 = vrot.slane %v559, %v947
    %v949 = vlaneseq
    %v950 = vshrl.u32 %v949, 7
    %v951 = vsub.s32 %v928, %v950
    %v952 = vrot.slane %v562, %v951
    %v953 = vlaneseq
    %v954 = vshrl.u32 %v953, 7
    %v955 = vsub.s32 %v928, %v954
    %v956 = vrot.slane %v565, %v955
    %v957 = vlaneseq
    %v958 = vshrl.u32 %v957, 7
    %v959 = vsub.s32 %v928, %v958
    %v960 = vrot.slane %v568, %v959
    %v961 = vsel %vm611, %v936, %v932
    %v962 = vsel %vm613, %v940, %v961
    %v963 = vsel %vm615, %v944, %v962
    %v964 = vsel %vm617, %v948, %v963
    %v965 = vsel %vm619, %v952, %v964
    %v966 = vsel %vm621, %v956, %v965
    %v967 = vsel %vm623, %v960, %v966
    %vm969 = vcmask 64512
    %v970 = vsel %vm969, %v624, %v673
    %vm971 = vcmask 130048
    %v972 = vsel %vm971, %v970, %v722
    %vm973 = vcmask 195584
    %v974 = vsel %vm973, %v972, %v771
    %v975 = vsel %vm96, %v974, %v820
    %vm976 = vcmask 326656
    %v977 = vsel %vm976, %v975, %v869
    %vm978 = vcmask 392192
    %v979 = vsel %vm978, %v977, %v918
    %vm980 = vcmask 457728
    %v981 = vsel %vm980, %v979, %v967
    %vm982 = vcmask 523264
    %983 = vst.msk [vmem:[#allocation7] sm:$0xff] %vm982, %v981
    // Predicated region
    $region18: #{tpu_custom_call.1} parent=1 // pred_check
      _
    $region19: #{tpu_custom_call.1} parent=1 // pred_check_branch
      %985 = sbr.rel (0) target = $region21
    $region20: #{tpu_custom_call.1} parent=1 // pred_region
      %s987 = ssub.s32 128, 128
      %988 = vsyncadd [#allocation4], %s987
      %s990 = sshll.u32 [#allocation7], 4
      %s991 = int_to_ptr.vmem [resolvable:$true] %s990
      %993 = dma.vmem_to_hbm [thread:$0]  %s991, 128, %s2, [#allocation4]
    $region21: #{tpu_custom_call.1} parent=1 // pred_fallthru
      _
    // Predicated region
    $region22: #{tpu_custom_call.1} parent=1 // pred_check
      _
    $region23: #{tpu_custom_call.1} parent=1 // pred_check_branch
      %995 = sbr.rel (0) target = $region25
    $region24: #{tpu_custom_call.1} parent=1 // pred_region
      %996 = dma.done [#allocation4], 128
    $region25: #{tpu_custom_call.1} parent=1 // pred_fallthru
      _
    %997 = vsyncpa [#allocation3], 1
    %998 = vsyncpa [#allocation6], 1
    %999 = vsyncpa [#allocation4], 1

</llo_original>
